<compile_context>
chip_gen: v6e
topology: v6e:2x2x1
jax: 0.10.0
libtpu: 0.0.40
codegen_flags: <defaults>
</compile_context>

<pallas_src>
import functools

import jax
import jax.numpy as jnp
from jax.experimental import pallas as pl
from jax.experimental.pallas import tpu as pltpu


def _mish_fast(x):
    # F.mish(x) = x * tanh(softplus(x)).  With t = e^x and u = (1 + t)^2:
    #   tanh(log(1 + t)) = (u - 1) / (u + 1)
    # so mish costs one EUP exp + one approx reciprocal instead of ~3
    # transcendentals.  For x > 20, mish(x) == x to f32 precision (this also
    # guards exp overflow).  Kept entirely in f32: v5e's VPU/EUP have no bf16,
    # so bf16 elementwise math would only add converts.
    t = jnp.exp(x)
    u = (1.0 + t) * (1.0 + t)
    y = x * (u - 1.0) * pl.reciprocal(u + 1.0, approx=True)
    return jnp.where(x > 20.0, x, y)


def time_embedding_kernel(batch, n_channels,
                          t_ref, table_ref, w1_ref, b1_ref, w2_ref, b2_ref,
                          c1w_ref, c1b_ref, wk_ref, cob_ref, o_ref):
    C = n_channels
    de_pad = table_ref.shape[1]            # dim_embed padded to 128 lanes

    # Fused gather + channel replication, no scratch roundtrip: each timestep
    # row is loaded once and sublane-broadcast to its C channel rows; the
    # (B*C, de_pad) slab is assembled with a static concatenate and fed
    # straight into fc1 (no VMEM store->load, no masked stores).
    rows = [
        jnp.broadcast_to(table_ref[pl.ds(t_ref[b], 1), :], (C, de_pad))
        for b in range(batch)
    ]
    emb = rows[0] if batch == 1 else jnp.concatenate(rows, axis=0)

    # fc1 -> mish -> fc2.  Weights are bf16 (half the weight DMA, native MXU
    # input); activations cast to bf16 only at the dot inputs, accumulation
    # and all elementwise math stay f32.
    h = _mish_fast(
        jnp.dot(emb.astype(jnp.bfloat16), w1_ref[...],
                preferred_element_type=jnp.float32) + b1_ref[...])
    out = (jnp.dot(h.astype(jnp.bfloat16), w2_ref[...],
                   preferred_element_type=jnp.float32)
           + b2_ref[...])                                  # (B*C, dim) f32

    # conv1 (1 -> C, k=1) + mish + residual, vectorized over the whole slab.
    x = _mish_fast(c1w_ref[...] * _mish_fast(out) + c1b_ref[...])
    s = x + out

    # conv_out (C -> C, k=1): one small MXU matmul with kron(I_B, W_out); the
    # bias is a (B*C, 1) column added once.
    # TODO(synk): swap the kron weight for a per-batch-block (C, C) mix before
    # scaling batch (kron grows O((B*C)^2) and wastes MXU passes on zeros).
    y = (jnp.dot(wk_ref[...], s, preferred_element_type=jnp.float32)
         + cob_ref[...])
    o_ref[...] = y                          # single unmasked (B*C, dim) store


def time_embedding_forward(t_idx, packed, *, batch, n_channels, dim):
    rows = batch * n_channels
    vmem = pl.BlockSpec(memory_space=pltpu.MemorySpace.VMEM)
    smem = pl.BlockSpec(memory_space=pltpu.MemorySpace.SMEM)
    kernel = functools.partial(time_embedding_kernel, batch, n_channels)
    # Clamp: Pallas does not bounds-check dynamic VMEM slices; an OOB timestep
    # would silently read adjacent/stale VMEM.
    t_idx = jnp.clip(t_idx.astype(jnp.int32), 0,
                     packed["embeddings"].shape[0] - 1)
    y = pl.pallas_call(
        kernel,
        out_shape=jax.ShapeDtypeStruct((rows, dim), jnp.float32),
        in_specs=[smem] + [vmem] * 9,
        out_specs=vmem,
    )(t_idx, packed["embeddings"],
      packed["w1"], packed["b1"], packed["w2"], packed["b2"],
      packed["c1w_col"], packed["c1b_col"], packed["w_kron"], packed["cob_col"])
    # Rows are ordered b*C + c, so this reshape is metadata-only.
    return y.reshape(batch, n_channels, dim)


def embed_table(number_of_diffusions, dim_embed):
    t = jnp.arange(number_of_diffusions, dtype=jnp.float32) + 1.0
    half_dim = dim_embed // 2
    scale = 10.0 / (half_dim - 1)
    freqs = jnp.exp(jnp.arange(half_dim, dtype=jnp.float32) * -scale)
    emb = t[:, None] * freqs[None, :]
    return jnp.concatenate([jnp.sin(emb), jnp.cos(emb)], axis=-1)


def init_params(key, dim, number_of_diffusions, n_channels, dim_embed, dim_latent):
    ks = jax.random.split(key, 8)

    def uni(k, fan_in, shape):
        bound = 1.0 / float(fan_in) ** 0.5
        return jax.random.uniform(k, shape, jnp.float32, -bound, bound)

    return dict(
        embeddings=embed_table(number_of_diffusions, dim_embed),   # (T, dim_embed)
        w1=uni(ks[0], dim_embed, (dim_embed, dim_latent)),          # fc1.weight.T
        b1=uni(ks[1], dim_embed, (1, dim_latent)),                  # fc1.bias
        w2=uni(ks[2], dim_latent, (dim_latent, dim)),               # fc2.weight.T
        b2=uni(ks[3], dim_latent, (1, dim)),                        # fc2.bias
        c1w=uni(ks[4], 1, (n_channels,)),                           # conv1.weight[:,0,0]
        c1b=uni(ks[5], 1, (n_channels,)),                           # conv1.bias
        cow=uni(ks[6], n_channels, (n_channels * n_channels,)),     # conv_out.weight[:,:,0]
        cob=uni(ks[7], n_channels, (n_channels,)),                  # conv_out.bias
    )


def pack_params(params, n_channels, batch, *, lane=128):
    # One-time layout packing for the kernel (outside the hot path):
    #  * dim_embed is zero-padded to the 128-lane vreg width (table columns and
    #    w1's K rows) -> full-lane, unmasked tiles at zero extra MXU cost.
    #  * w1/w2 are stored bf16 (MXU-native, half the weight DMA).
    #  * c1w/c1b/cob become (B*C, 1) columns matching slab row order b*C + c.
    #  * conv_out's (C, C) weight becomes kron(I_B, W) so channel mixing of the
    #    whole slab is one small MXU matmul (fine at small B; see TODO above).
    C = n_channels
    rows = batch * C
    table = params["embeddings"]
    de = table.shape[1]
    de_pad = ((de + lane - 1) // lane) * lane
    de_pad = max(de_pad, lane)
    table_p = jnp.pad(table, ((0, 0), (0, de_pad - de)))
    w1_p = jnp.pad(params["w1"], ((0, de_pad - de), (0, 0)))
    W = params["cow"].reshape(C, C)
    return dict(
        embeddings=table_p,                                   # (T, de_pad) f32
        w1=w1_p.astype(jnp.bfloat16),                         # (de_pad, dl) bf16
        b1=params["b1"],                                      # f32
        w2=params["w2"].astype(jnp.bfloat16),                 # (dl, dim) bf16
        b2=params["b2"],                                      # f32
        c1w_col=jnp.tile(params["c1w"], batch).reshape(rows, 1),
        c1b_col=jnp.tile(params["c1b"], batch).reshape(rows, 1),
        w_kron=jnp.kron(jnp.eye(batch, dtype=jnp.float32), W),
        cob_col=jnp.tile(params["cob"], batch).reshape(rows, 1),
    )


def reference_forward(t_idx, params, n_channels):
    def mish(v):
        return v * jnp.tanh(jax.nn.softplus(v))

    emb = params["embeddings"][t_idx]
    h = mish(emb @ params["w1"] + params["b1"])
    out = h @ params["w2"] + params["b2"]                     # (B, dim)
    x = mish(mish(out)[:, None, :] * params["c1w"][None, :, None]
             + params["c1b"][None, :, None])                  # (B, C, dim)
    s = x + jnp.broadcast_to(out[:, None, :], x.shape)
    W = params["cow"].reshape(n_channels, n_channels)
    return jnp.einsum("oc,bcd->bod", W, s) + params["cob"][None, :, None]


if __name__ == "__main__":
    B = 2
    dim = 128
    number_of_diffusions = 50
    n_channels = 4
    dim_embed = 64
    dim_latent = 128

    key = jax.random.PRNGKey(0)
    kp, kt = jax.random.split(key)
    params = init_params(kp, dim, number_of_diffusions, n_channels,
                         dim_embed, dim_latent)
    packed = pack_params(params, n_channels, B)
    t_idx = jax.random.randint(kt, (B,), 0, number_of_diffusions,
                               dtype=jnp.int32)

    y = time_embedding_forward(t_idx, packed, batch=B,
                               n_channels=n_channels, dim=dim)
    y = jax.block_until_ready(y)

    y_ref = reference_forward(t_idx, params, n_channels)
    assert y.shape == (B, n_channels, dim), y.shape
    max_err = float(jnp.max(jnp.abs(y - y_ref)))
    # bf16 MXU operands + approx-reciprocal mish: ~1e-3-level abs error typical;
    # 2e-2 gives headroom for worst-case alignment through conv_out.
    if max_err > 2e-2:
        raise AssertionError(f"kernel/reference mismatch, max abs err = {max_err}")

    print("KERNEL_OK")
</pallas_src>

<mosaic_0001>
module attributes {stable_mosaic.version = 11 : i64} {
  func.func @time_embedding_kernel(%arg0: memref<2xi32, #tpu.memory_space<smem>>, %arg1: memref<50x128xf32, #tpu.memory_space<vmem>>, %arg2: memref<128x128xbf16, #tpu.memory_space<vmem>>, %arg3: memref<1x128xf32, #tpu.memory_space<vmem>>, %arg4: memref<128x128xbf16, #tpu.memory_space<vmem>>, %arg5: memref<1x128xf32, #tpu.memory_space<vmem>>, %arg6: memref<8x1xf32, #tpu.memory_space<vmem>>, %arg7: memref<8x1xf32, #tpu.memory_space<vmem>>, %arg8: memref<8x8xf32, #tpu.memory_space<vmem>>, %arg9: memref<8x1xf32, #tpu.memory_space<vmem>>, %arg10: memref<8x128xf32, #tpu.memory_space<vmem>>) attributes {dimension_semantics = [], scalar_prefetch = 0 : i64, scratch_operands = 0 : i64, tpu.core_type = #tpu.core_type<tc>} {
    %c0 = arith.constant 0 : index
    %0 = memref.load %arg0[%c0] : memref<2xi32, #tpu.memory_space<smem>>
    %1 = arith.index_cast %0 : i32 to index
    %c0_0 = arith.constant 0 : index
    %2 = vector.load %arg1[%1, %c0_0] : memref<50x128xf32, #tpu.memory_space<vmem>>, vector<1x128xf32>
    %3 = vector.shape_cast %2 : vector<1x128xf32> to vector<1x128xf32>
    %4 = vector.broadcast %3 : vector<1x128xf32> to vector<4x128xf32>
    %c1 = arith.constant 1 : index
    %5 = memref.load %arg0[%c1] : memref<2xi32, #tpu.memory_space<smem>>
    %6 = arith.index_cast %5 : i32 to index
    %c0_1 = arith.constant 0 : index
    %7 = vector.load %arg1[%6, %c0_1] : memref<50x128xf32, #tpu.memory_space<vmem>>, vector<1x128xf32>
    %8 = vector.shape_cast %7 : vector<1x128xf32> to vector<1x128xf32>
    %9 = vector.broadcast %8 : vector<1x128xf32> to vector<4x128xf32>
    %10 = tpu.concatenate %4, %9 in 0 : vector<4x128xf32>, vector<4x128xf32> -> vector<8x128xf32>
    %11 = arith.truncf %10 : vector<8x128xf32> to vector<8x128xbf16>
    %c0_2 = arith.constant 0 : index
    %c0_3 = arith.constant 0 : index
    %12 = vector.load %arg2[%c0_2, %c0_3] : memref<128x128xbf16, #tpu.memory_space<vmem>>, vector<128x128xbf16>
    %cst = arith.constant dense<0.000000e+00> : vector<8x128xf32>
    %13 = tpu.matmul %11, %12, %cst {dimension_numbers = #tpu.dot_dimension_numbers<[1], [0], [0], [1], [0, 0, 1, 1], [], []>} : vector<8x128xbf16>, vector<128x128xbf16>, vector<8x128xf32> -> vector<8x128xf32>
    %c0_4 = arith.constant 0 : index
    %c0_5 = arith.constant 0 : index
    %14 = vector.load %arg3[%c0_4, %c0_5] : memref<1x128xf32, #tpu.memory_space<vmem>>, vector<1x128xf32>
    %15 = vector.broadcast %14 : vector<1x128xf32> to vector<8x128xf32>
    %16 = arith.addf %13, %15 : vector<8x128xf32>
    %17 = math.exp %16 : vector<8x128xf32>
    %cst_6 = arith.constant 1.000000e+00 : f32
    %18 = vector.broadcast %cst_6 : f32 to vector<8x128xf32>
    %19 = arith.addf %18, %17 : vector<8x128xf32>
    %cst_7 = arith.constant 1.000000e+00 : f32
    %20 = vector.broadcast %cst_7 : f32 to vector<8x128xf32>
    %21 = arith.addf %20, %17 : vector<8x128xf32>
    %22 = arith.mulf %19, %21 : vector<8x128xf32>
    %cst_8 = arith.constant 1.000000e+00 : f32
    %23 = vector.broadcast %cst_8 : f32 to vector<8x128xf32>
    %24 = arith.subf %22, %23 : vector<8x128xf32>
    %25 = arith.mulf %16, %24 : vector<8x128xf32>
    %cst_9 = arith.constant 1.000000e+00 : f32
    %26 = vector.broadcast %cst_9 : f32 to vector<8x128xf32>
    %27 = arith.addf %22, %26 : vector<8x128xf32>
    %28 = tpu.reciprocal %27 {approx = true} : vector<8x128xf32> -> vector<8x128xf32>
    %29 = arith.mulf %25, %28 : vector<8x128xf32>
    %cst_10 = arith.constant 2.000000e+01 : f32
    %30 = vector.broadcast %cst_10 : f32 to vector<8x128xf32>
    %31 = arith.cmpf ogt, %16, %30 : vector<8x128xf32>
    %32 = arith.select %31, %16, %29 : vector<8x128xi1>, vector<8x128xf32>
    %33 = arith.truncf %32 : vector<8x128xf32> to vector<8x128xbf16>
    %c0_11 = arith.constant 0 : index
    %c0_12 = arith.constant 0 : index
    %34 = vector.load %arg4[%c0_11, %c0_12] : memref<128x128xbf16, #tpu.memory_space<vmem>>, vector<128x128xbf16>
    %cst_13 = arith.constant dense<0.000000e+00> : vector<8x128xf32>
    %35 = tpu.matmul %33, %34, %cst_13 {dimension_numbers = #tpu.dot_dimension_numbers<[1], [0], [0], [1], [0, 0, 1, 1], [], []>} : vector<8x128xbf16>, vector<128x128xbf16>, vector<8x128xf32> -> vector<8x128xf32>
    %c0_14 = arith.constant 0 : index
    %c0_15 = arith.constant 0 : index
    %36 = vector.load %arg5[%c0_14, %c0_15] : memref<1x128xf32, #tpu.memory_space<vmem>>, vector<1x128xf32>
    %37 = vector.broadcast %36 : vector<1x128xf32> to vector<8x128xf32>
    %38 = arith.addf %35, %37 : vector<8x128xf32>
    %c0_16 = arith.constant 0 : index
    %c0_17 = arith.constant 0 : index
    %39 = vector.load %arg6[%c0_16, %c0_17] : memref<8x1xf32, #tpu.memory_space<vmem>>, vector<8x1xf32>
    %40 = math.exp %38 : vector<8x128xf32>
    %cst_18 = arith.constant 1.000000e+00 : f32
    %41 = vector.broadcast %cst_18 : f32 to vector<8x128xf32>
    %42 = arith.addf %41, %40 : vector<8x128xf32>
    %cst_19 = arith.constant 1.000000e+00 : f32
    %43 = vector.broadcast %cst_19 : f32 to vector<8x128xf32>
    %44 = arith.addf %43, %40 : vector<8x128xf32>
    %45 = arith.mulf %42, %44 : vector<8x128xf32>
    %cst_20 = arith.constant 1.000000e+00 : f32
    %46 = vector.broadcast %cst_20 : f32 to vector<8x128xf32>
    %47 = arith.subf %45, %46 : vector<8x128xf32>
    %48 = arith.mulf %38, %47 : vector<8x128xf32>
    %cst_21 = arith.constant 1.000000e+00 : f32
    %49 = vector.broadcast %cst_21 : f32 to vector<8x128xf32>
    %50 = arith.addf %45, %49 : vector<8x128xf32>
    %51 = tpu.reciprocal %50 {approx = true} : vector<8x128xf32> -> vector<8x128xf32>
    %52 = arith.mulf %48, %51 : vector<8x128xf32>
    %cst_22 = arith.constant 2.000000e+01 : f32
    %53 = vector.broadcast %cst_22 : f32 to vector<8x128xf32>
    %54 = arith.cmpf ogt, %38, %53 : vector<8x128xf32>
    %55 = arith.select %54, %38, %52 : vector<8x128xi1>, vector<8x128xf32>
    %56 = vector.broadcast %39 : vector<8x1xf32> to vector<8x128xf32>
    %57 = arith.mulf %56, %55 : vector<8x128xf32>
    %c0_23 = arith.constant 0 : index
    %c0_24 = arith.constant 0 : index
    %58 = vector.load %arg7[%c0_23, %c0_24] : memref<8x1xf32, #tpu.memory_space<vmem>>, vector<8x1xf32>
    %59 = vector.broadcast %58 : vector<8x1xf32> to vector<8x128xf32>
    %60 = arith.addf %57, %59 : vector<8x128xf32>
    %61 = math.exp %60 : vector<8x128xf32>
    %cst_25 = arith.constant 1.000000e+00 : f32
    %62 = vector.broadcast %cst_25 : f32 to vector<8x128xf32>
    %63 = arith.addf %62, %61 : vector<8x128xf32>
    %cst_26 = arith.constant 1.000000e+00 : f32
    %64 = vector.broadcast %cst_26 : f32 to vector<8x128xf32>
    %65 = arith.addf %64, %61 : vector<8x128xf32>
    %66 = arith.mulf %63, %65 : vector<8x128xf32>
    %cst_27 = arith.constant 1.000000e+00 : f32
    %67 = vector.broadcast %cst_27 : f32 to vector<8x128xf32>
    %68 = arith.subf %66, %67 : vector<8x128xf32>
    %69 = arith.mulf %60, %68 : vector<8x128xf32>
    %cst_28 = arith.constant 1.000000e+00 : f32
    %70 = vector.broadcast %cst_28 : f32 to vector<8x128xf32>
    %71 = arith.addf %66, %70 : vector<8x128xf32>
    %72 = tpu.reciprocal %71 {approx = true} : vector<8x128xf32> -> vector<8x128xf32>
    %73 = arith.mulf %69, %72 : vector<8x128xf32>
    %cst_29 = arith.constant 2.000000e+01 : f32
    %74 = vector.broadcast %cst_29 : f32 to vector<8x128xf32>
    %75 = arith.cmpf ogt, %60, %74 : vector<8x128xf32>
    %76 = arith.select %75, %60, %73 : vector<8x128xi1>, vector<8x128xf32>
    %77 = arith.addf %76, %38 : vector<8x128xf32>
    %c0_30 = arith.constant 0 : index
    %c0_31 = arith.constant 0 : index
    %78 = vector.load %arg8[%c0_30, %c0_31] : memref<8x8xf32, #tpu.memory_space<vmem>>, vector<8x8xf32>
    %cst_32 = arith.constant dense<0.000000e+00> : vector<8x128xf32>
    %79 = tpu.matmul %78, %77, %cst_32 {dimension_numbers = #tpu.dot_dimension_numbers<[1], [0], [0], [1], [0, 0, 1, 1], [], []>} : vector<8x8xf32>, vector<8x128xf32>, vector<8x128xf32> -> vector<8x128xf32>
    %c0_33 = arith.constant 0 : index
    %c0_34 = arith.constant 0 : index
    %80 = vector.load %arg9[%c0_33, %c0_34] : memref<8x1xf32, #tpu.memory_space<vmem>>, vector<8x1xf32>
    %81 = vector.broadcast %80 : vector<8x1xf32> to vector<8x128xf32>
    %82 = arith.addf %79, %81 : vector<8x128xf32>
    %c0_35 = arith.constant 0 : index
    %c0_36 = arith.constant 0 : index
    %83 = vector.load %arg10[%c0_35, %c0_36] : memref<8x128xf32, #tpu.memory_space<vmem>>, vector<8x128xf32>
    tpu.vector_store %arg10[%c0_35, %c0_36], %82 {strides = array<i32>} : memref<8x128xf32, #tpu.memory_space<vmem>>, vector<8x128xf32>,
    return
  }
}

</mosaic_0001>

<llo_original>
// kernel: tpu_custom_call.1
$region0: #{tpu_custom_call.1}
  #allocation0 [shape = 'u32[]', space=smem, size = 0x4, offset = 0x4, fixed_abs, tag = 'smem constant byte address 0x4 - core index']
  #allocation1 [shape = 'u32[144,128]{1,0:T(1,128)}', space=vmem, size = 0x12000, scoped, tag = 'internal scratch']
  %s0 = inlined_call_operand.vmem [shape: s32[2], index: 0, kind: input, shape index: {}]
  %s1 = inlined_call_operand.hbm [shape: f32[50,128], index: 1, kind: input, shape index: {}]
  %s2 = inlined_call_operand.hbm [shape: bf16[128,128], index: 2, kind: input, shape index: {}]
  %s3 = inlined_call_operand.vmem [shape: f32[1,128], index: 3, kind: input, shape index: {}]
  %s4 = inlined_call_operand.hbm [shape: bf16[128,128], index: 4, kind: input, shape index: {}]
  %s5 = inlined_call_operand.vmem [shape: f32[1,128], index: 5, kind: input, shape index: {}]
  %s6 = inlined_call_operand.vmem [shape: f32[8,1], index: 6, kind: input, shape index: {}]
  %s7 = inlined_call_operand.vmem [shape: f32[8,1], index: 7, kind: input, shape index: {}]
  %s8 = inlined_call_operand.vmem [shape: f32[8,8], index: 8, kind: input, shape index: {}]
  %s9 = inlined_call_operand.vmem [shape: f32[8,1], index: 9, kind: input, shape index: {}]
  %s10 = inlined_call_operand.hbm [shape: f32[8,128], index: 10, kind: output, shape index: {}]
  %s11 = sld [smem:[#allocation0]]
  $region66: #{tpu_custom_call.1} parent=0
    _
  %s13 = ssub.s32 1, %s11
  %s14 = scalar_select 0, %s13, %s11
  $region1: #{tpu_custom_call.1} parent=0
    #allocation2 [shape = 'u8[512]{0}', space=smem, size = 0x200, scoped, tag = 'input window, operand 0, single buffered']
    #allocation3 [shape = 's32[1]{0}', space=sflag, size = 0x4, scoped, tag = 'scoped memory for tpu_custom_call.1']
    #allocation4 [shape = 's32[1]{0}', space=sflag, size = 0x4, scoped, tag = 'scoped memory for tpu_custom_call.1']
    #allocation5 [shape = 's32[1]{0}', space=sflag, size = 0x4, scoped, tag = 'scoped memory for tpu_custom_call.1']
    #allocation6 [shape = 'u8[28672]{0}', space=vmem, size = 0x7000, scoped, tag = 'input window, operand 1, single buffered']
    #allocation7 [shape = 'u8[32768]{0}', space=vmem, size = 0x8000, scoped, tag = 'input window, operand 2, single buffered']
    #allocation8 [shape = 's32[1]{0}', space=sflag, size = 0x4, scoped, tag = 'scoped memory for tpu_custom_call.1']
    #allocation9 [shape = 'u8[32768]{0}', space=vmem, size = 0x8000, scoped, tag = 'input window, operand 4, single buffered']
    #allocation10 [shape = 'u8[4096]{0}', space=vmem, size = 0x1000, scoped, tag = 'output window, operand 0, single buffered']
    %15 = vsyncpa [#allocation5], 0
    %16 = vsyncpa [#allocation3], 0
    %17 = vsyncpa [#allocation8], 0
    %18 = vsyncpa [#allocation4], 0
    // Predicated region
    $region2: #{tpu_custom_call.1} parent=1 // pred_check
      _
    $region3: #{tpu_custom_call.1} parent=1 // pred_check_branch
      %20 = sbr.rel (0) target = $region5
    $region4: #{tpu_custom_call.1} parent=1 // pred_region
      %s22 = ssub.s32 16, 16
      %23 = vsyncadd [#allocation5], %s22
      %s25 = sshll.u32 %s0, 4
      %s26 = int_to_ptr.vmem [resolvable:$true] %s25
      %28 = dma.vmem_to_smem %s26, 16, [#allocation2], [#allocation5]
    $region5: #{tpu_custom_call.1} parent=1 // pred_fallthru
      _
    // Predicated region
    $region6: #{tpu_custom_call.1} parent=1 // pred_check
      _
    $region7: #{tpu_custom_call.1} parent=1 // pred_check_branch
      %30 = sbr.rel (0) target = $region9
    $region8: #{tpu_custom_call.1} parent=1 // pred_region
      %s32 = ssub.s32 896, 896
      %33 = vsyncadd [#allocation3], %s32
      %s34 = sshll.u32 [#allocation6], 4
      %s35 = int_to_ptr.vmem [resolvable:$true] %s34
      %40 = dma.hbm_to_vmem [thread:$0]  %s1, 896, %s35, [#allocation3], 128, 128, 8
    $region9: #{tpu_custom_call.1} parent=1 // pred_fallthru
      _
    // Predicated region
    $region10: #{tpu_custom_call.1} parent=1 // pred_check
      _
    $region11: #{tpu_custom_call.1} parent=1 // pred_check_branch
      %42 = sbr.rel (0) target = $region13
    $region12: #{tpu_custom_call.1} parent=1 // pred_region
      %s44 = ssub.s32 1024, 1024
      %45 = vsyncadd [#allocation8], %s44
      %s46 = sshll.u32 [#allocation7], 4
      %s47 = int_to_ptr.vmem [resolvable:$true] %s46
      %52 = dma.hbm_to_vmem [thread:$0]  %s2, 1024, %s47, [#allocation8], 64, 64, 4
    $region13: #{tpu_custom_call.1} parent=1 // pred_fallthru
      _
    // Predicated region
    $region14: #{tpu_custom_call.1} parent=1 // pred_check
      _
    $region15: #{tpu_custom_call.1} parent=1 // pred_check_branch
      %54 = sbr.rel (0) target = $region17
    $region16: #{tpu_custom_call.1} parent=1 // pred_region
      _
    $region17: #{tpu_custom_call.1} parent=1 // pred_fallthru
      _
    // Predicated region
    $region18: #{tpu_custom_call.1} parent=1 // pred_check
      _
    $region19: #{tpu_custom_call.1} parent=1 // pred_check_branch
      %56 = sbr.rel (0) target = $region21
    $region20: #{tpu_custom_call.1} parent=1 // pred_region
      %s58 = ssub.s32 1024, 1024
      %59 = vsyncadd [#allocation8], %s58
      %s60 = sshll.u32 [#allocation9], 4
      %s61 = int_to_ptr.vmem [resolvable:$true] %s60
      %66 = dma.hbm_to_vmem [thread:$0]  %s4, 1024, %s61, [#allocation8], 64, 64, 4
    $region21: #{tpu_custom_call.1} parent=1 // pred_fallthru
      _
    // Predicated region
    $region22: #{tpu_custom_call.1} parent=1 // pred_check
      _
    $region23: #{tpu_custom_call.1} parent=1 // pred_check_branch
      %68 = sbr.rel (0) target = $region25
    $region24: #{tpu_custom_call.1} parent=1 // pred_region
      _
    $region25: #{tpu_custom_call.1} parent=1 // pred_fallthru
      _
    // Predicated region
    $region26: #{tpu_custom_call.1} parent=1 // pred_check
      _
    $region27: #{tpu_custom_call.1} parent=1 // pred_check_branch
      %70 = sbr.rel (0) target = $region29
    $region28: #{tpu_custom_call.1} parent=1 // pred_region
      _
    $region29: #{tpu_custom_call.1} parent=1 // pred_fallthru
      _
    // Predicated region
    $region30: #{tpu_custom_call.1} parent=1 // pred_check
      _
    $region31: #{tpu_custom_call.1} parent=1 // pred_check_branch
      %72 = sbr.rel (0) target = $region33
    $region32: #{tpu_custom_call.1} parent=1 // pred_region
      _
    $region33: #{tpu_custom_call.1} parent=1 // pred_fallthru
      _
    // Predicated region
    $region34: #{tpu_custom_call.1} parent=1 // pred_check
      _
    $region35: #{tpu_custom_call.1} parent=1 // pred_check_branch
      %74 = sbr.rel (0) target = $region37
    $region36: #{tpu_custom_call.1} parent=1 // pred_region
      _
    $region37: #{tpu_custom_call.1} parent=1 // pred_fallthru
      _
    // Predicated region
    $region38: #{tpu_custom_call.1} parent=1 // pred_check
      _
    $region39: #{tpu_custom_call.1} parent=1 // pred_check_branch
      %76 = sbr.rel (0) target = $region41
    $region40: #{tpu_custom_call.1} parent=1 // pred_region
      _
    $region41: #{tpu_custom_call.1} parent=1 // pred_fallthru
      _
    // Predicated region
    $region42: #{tpu_custom_call.1} parent=1 // pred_check
      _
    $region43: #{tpu_custom_call.1} parent=1 // pred_check_branch
      %78 = sbr.rel (0) target = $region45
    $region44: #{tpu_custom_call.1} parent=1 // pred_region
      %79 = dma.done [#allocation5], 16
    $region45: #{tpu_custom_call.1} parent=1 // pred_fallthru
      _
    // Predicated region
    $region46: #{tpu_custom_call.1} parent=1 // pred_check
      _
    $region47: #{tpu_custom_call.1} parent=1 // pred_check_branch
      %81 = sbr.rel (0) target = $region49
    $region48: #{tpu_custom_call.1} parent=1 // pred_region
      %82 = dma.done [#allocation3], 896
    $region49: #{tpu_custom_call.1} parent=1 // pred_fallthru
      _
    // Predicated region
    $region50: #{tpu_custom_call.1} parent=1 // pred_check
      _
    $region51: #{tpu_custom_call.1} parent=1 // pred_check_branch
      %84 = sbr.rel (0) target = $region53
    $region52: #{tpu_custom_call.1} parent=1 // pred_region
      %85 = dma.done [#allocation8], 1024
    $region53: #{tpu_custom_call.1} parent=1 // pred_fallthru
      _
    // Predicated region
    $region54: #{tpu_custom_call.1} parent=1 // pred_check
      _
    $region55: #{tpu_custom_call.1} parent=1 // pred_check_branch
      %87 = sbr.rel (0) target = $region57
    $region56: #{tpu_custom_call.1} parent=1 // pred_region
      %88 = dma.done [#allocation8], 1024
    $region57: #{tpu_custom_call.1} parent=1 // pred_fallthru
      _
    %89 = sfence
    %s91 = sld [smem:[#allocation2]]
    %s92 = scalar_lea.vmem [#allocation6], %s91
    %v93 = vld [vmem:[%s92] sm:$0x1]
    %v94 = vlaneseq
    %v95 = vshrl.u32 %v94, 7
    %v96 = vsub.s32 0, %v95
    %v97 = vrot.slane %v93, %v96
    %s98 = sld [smem:[#allocation2 + $0x1]]
    %s99 = scalar_lea.vmem [#allocation6], %s98
    %v100 = vld [vmem:[%s99] sm:$0x1]
    %v101 = vlaneseq
    %v102 = vshrl.u32 %v101, 7
    %v103 = vsub.s32 0, %v102
    %v104 = vrot.slane %v100, %v103
    %vm105 = vcmask 1043456
    %v106 = vsel %vm105, %v97, %v104
    %v107 = vpack.c.bf16 %v106, %v106
    %v108 = vld [vmem:[#allocation7] sm:$0xf]
    %v109 = vld [vmem:[#allocation7 + $0x4] sm:$0xf]
    %v110 = vld [vmem:[#allocation7 + $0x8] sm:$0xf]
    %v111 = vld [vmem:[#allocation7 + $0xc] sm:$0xf]
    %v112 = vld [vmem:[#allocation7 + $0x10] sm:$0xf]
    %v113 = vld [vmem:[#allocation7 + $0x14] sm:$0xf]
    %v114 = vld [vmem:[#allocation7 + $0x18] sm:$0xf]
    %v115 = vld [vmem:[#allocation7 + $0x1c] sm:$0xf]
    %v116 = vld [vmem:[#allocation7 + $0x20] sm:$0xf]
    %v117 = vld [vmem:[#allocation7 + $0x24] sm:$0xf]
    %v118 = vld [vmem:[#allocation7 + $0x28] sm:$0xf]
    %v119 = vld [vmem:[#allocation7 + $0x2c] sm:$0xf]
    %v120 = vld [vmem:[#allocation7 + $0x30] sm:$0xf]
    %v121 = vld [vmem:[#allocation7 + $0x34] sm:$0xf]
    %v122 = vld [vmem:[#allocation7 + $0x38] sm:$0xf]
    %v123 = vld [vmem:[#allocation7 + $0x3c] sm:$0xf]
    %v124 = vld [vmem:[%s3] sm:$0x1]
    %v126 = vlaneseq
    %v127 = vshrl.u32 %v126, 7
    %v128 = vsub.s32 0, %v127
    %v129 = vrot.slane %v124, %v128
    %v147 = vunpack.c.l.b16 %v108
    %v148 = vunpack.c.l.b16 %v109
    %v149 = vunpack.c.l.b16 %v110
    %v150 = vunpack.c.l.b16 %v111
    %v151 = vunpack.c.l.b16 %v112
    %v152 = vunpack.c.l.b16 %v113
    %v153 = vunpack.c.l.b16 %v114
    %v154 = vunpack.c.l.b16 %v115
    %v155 = vunpack.c.l.b16 %v116
    %v156 = vunpack.c.l.b16 %v117
    %v157 = vunpack.c.l.b16 %v118
    %v158 = vunpack.c.l.b16 %v119
    %v159 = vunpack.c.l.b16 %v120
    %v160 = vunpack.c.l.b16 %v121
    %v161 = vunpack.c.l.b16 %v122
    %v162 = vunpack.c.l.b16 %v123
    %v163 = vpack.c.b16 %v148, %v147
    %v164 = vpack.c.b16 %v150, %v149
    %v165 = vpack.c.b16 %v152, %v151
    %v166 = vpack.c.b16 %v154, %v153
    %v167 = vpack.c.b16 %v156, %v155
    %v168 = vpack.c.b16 %v158, %v157
    %v169 = vpack.c.b16 %v160, %v159
    %v170 = vpack.c.b16 %v162, %v161
    %179 = vmatprep.subr.bf16.mxu0 0
    %180 = vmatpush1.bf16.msra.mxu0 %v170
    %181 = vmatprep.subr.bf16.mxu0 0
    %182 = vmatpush1.bf16.msra.mxu0 %v169
    %183 = vmatprep.subr.bf16.mxu0 0
    %184 = vmatpush1.bf16.msra.mxu0 %v168
    %185 = vmatprep.subr.bf16.mxu0 0
    %186 = vmatpush1.bf16.msra.mxu0 %v167
    %187 = vmatprep.subr.bf16.mxu0 0
    %188 = vmatpush1.bf16.msra.mxu0 %v166
    %189 = vmatprep.subr.bf16.mxu0 0
    %190 = vmatpush1.bf16.msra.mxu0 %v165
    %191 = vmatprep.subr.bf16.mxu0 0
    %192 = vmatpush1.bf16.msra.mxu0 %v164
    %193 = vmatprep.subr.bf16.mxu0 0
    %194 = vmatpush1.bf16.msra.mxu0 %v163
    %195 = vmatprep.subr.bf16.mxu0 0
    %196 = vmatpush2.bf16.msra.mxu0 0
    %197 = vmatprep.subr.bf16.mxu0 0
    %198 = vmatpush2.bf16.msra.mxu0 0
    %199 = vmatprep.subr.bf16.mxu0 0
    %200 = vmatpush2.bf16.msra.mxu0 0
    %201 = vmatprep.subr.bf16.mxu0 0
    %202 = vmatpush2.bf16.msra.mxu0 0
    %203 = vmatprep.subr.bf16.mxu0 0
    %204 = vmatpush2.bf16.msra.mxu0 0
    %205 = vmatprep.subr.bf16.mxu0 0
    %206 = vmatpush2.bf16.msra.mxu0 0
    %207 = vmatprep.subr.bf16.mxu0 0
    %208 = vmatpush2.bf16.msra.mxu0 0
    %209 = vmatprep.subr.bf16.mxu0 0
    %210 = vmatpush2.bf16.msra.mxu0 0
    %211 = vmatprep.mubr.bf16.mxu0 0
    %212 = vmatmul.mubr.bf16.gmra.mxu0 %v107
    %v213 = vpop.f32.mrf.mxu0
    %v214 = vadd.f32 %v129, %v213
    %v215 = vpop.f32.mrf.mxu0
    %v216 = vpop.f32.mrf.mxu0
    %v217 = vpop.f32.mrf.mxu0
    %218 = vdwg.mxu0
    %v219 = vmul.f32 %v214, 1.442695
    %v220 = vpow.pop %v219
    %v221 = vadd.f32 %v220, 1.0
    %v222 = vmul.f32 %v221, %v221
    %v223 = vsub.f32 %v222, 1.0
    %v224 = vmul.f32 %v214, %v223
    %v225 = vadd.f32 %v222, 1.0
    %v226 = vrcp.pop %v225
    %v227 = vmul.f32 %v224, %v226
    %vm228 = vcmp.gt.f32.partialorder %v214, 20.0
    %v229 = vsel %vm228, %v214, %v227
    %v230 = vpack.c.bf16 %v229, %v229
    %v231 = vld [vmem:[#allocation9] sm:$0xf]
    %v232 = vld [vmem:[#allocation9 + $0x4] sm:$0xf]
    %v233 = vld [vmem:[#allocation9 + $0x8] sm:$0xf]
    %v234 = vld [vmem:[#allocation9 + $0xc] sm:$0xf]
    %v235 = vld [vmem:[#allocation9 + $0x10] sm:$0xf]
    %v236 = vld [vmem:[#allocation9 + $0x14] sm:$0xf]
    %v237 = vld [vmem:[#allocation9 + $0x18] sm:$0xf]
    %v238 = vld [vmem:[#allocation9 + $0x1c] sm:$0xf]
    %v239 = vld [vmem:[#allocation9 + $0x20] sm:$0xf]
    %v240 = vld [vmem:[#allocation9 + $0x24] sm:$0xf]
    %v241 = vld [vmem:[#allocation9 + $0x28] sm:$0xf]
    %v242 = vld [vmem:[#allocation9 + $0x2c] sm:$0xf]
    %v243 = vld [vmem:[#allocation9 + $0x30] sm:$0xf]
    %v244 = vld [vmem:[#allocation9 + $0x34] sm:$0xf]
    %v245 = vld [vmem:[#allocation9 + $0x38] sm:$0xf]
    %v246 = vld [vmem:[#allocation9 + $0x3c] sm:$0xf]
    %v247 = vld [vmem:[%s5] sm:$0x1]
    %v249 = vlaneseq
    %v250 = vshrl.u32 %v249, 7
    %v251 = vsub.s32 0, %v250
    %v252 = vrot.slane %v247, %v251
    %v270 = vunpack.c.l.b16 %v231
    %v271 = vunpack.c.l.b16 %v232
    %v272 = vunpack.c.l.b16 %v233
    %v273 = vunpack.c.l.b16 %v234
    %v274 = vunpack.c.l.b16 %v235
    %v275 = vunpack.c.l.b16 %v236
    %v276 = vunpack.c.l.b16 %v237
    %v277 = vunpack.c.l.b16 %v238
    %v278 = vunpack.c.l.b16 %v239
    %v279 = vunpack.c.l.b16 %v240
    %v280 = vunpack.c.l.b16 %v241
    %v281 = vunpack.c.l.b16 %v242
    %v282 = vunpack.c.l.b16 %v243
    %v283 = vunpack.c.l.b16 %v244
    %v284 = vunpack.c.l.b16 %v245
    %v285 = vunpack.c.l.b16 %v246
    %v286 = vpack.c.b16 %v271, %v270
    %v287 = vpack.c.b16 %v273, %v272
    %v288 = vpack.c.b16 %v275, %v274
    %v289 = vpack.c.b16 %v277, %v276
    %v290 = vpack.c.b16 %v279, %v278
    %v291 = vpack.c.b16 %v281, %v280
    %v292 = vpack.c.b16 %v283, %v282
    %v293 = vpack.c.b16 %v285, %v284
    %302 = vmatprep.subr.bf16.mxu0 0
    %303 = vmatpush1.bf16.msra.mxu0 %v293
    %304 = vmatprep.subr.bf16.mxu0 0
    %305 = vmatpush1.bf16.msra.mxu0 %v292
    %306 = vmatprep.subr.bf16.mxu0 0
    %307 = vmatpush1.bf16.msra.mxu0 %v291
    %308 = vmatprep.subr.bf16.mxu0 0
    %309 = vmatpush1.bf16.msra.mxu0 %v290
    %310 = vmatprep.subr.bf16.mxu0 0
    %311 = vmatpush1.bf16.msra.mxu0 %v289
    %312 = vmatprep.subr.bf16.mxu0 0
    %313 = vmatpush1.bf16.msra.mxu0 %v288
    %314 = vmatprep.subr.bf16.mxu0 0
    %315 = vmatpush1.bf16.msra.mxu0 %v287
    %316 = vmatprep.subr.bf16.mxu0 0
    %317 = vmatpush1.bf16.msra.mxu0 %v286
    %318 = vmatprep.subr.bf16.mxu0 0
    %319 = vmatpush2.bf16.msra.mxu0 0
    %320 = vmatprep.subr.bf16.mxu0 0
    %321 = vmatpush2.bf16.msra.mxu0 0
    %322 = vmatprep.subr.bf16.mxu0 0
    %323 = vmatpush2.bf16.msra.mxu0 0
    %324 = vmatprep.subr.bf16.mxu0 0
    %325 = vmatpush2.bf16.msra.mxu0 0
    %326 = vmatprep.subr.bf16.mxu0 0
    %327 = vmatpush2.bf16.msra.mxu0 0
    %328 = vmatprep.subr.bf16.mxu0 0
    %329 = vmatpush2.bf16.msra.mxu0 0
    %330 = vmatprep.subr.bf16.mxu0 0
    %331 = vmatpush2.bf16.msra.mxu0 0
    %332 = vmatprep.subr.bf16.mxu0 0
    %333 = vmatpush2.bf16.msra.mxu0 0
    %334 = vmatprep.mubr.bf16.mxu0 0
    %335 = vmatmul.mubr.bf16.gmra.mxu0 %v230
    %v336 = vpop.f32.mrf.mxu0
    %v337 = vadd.f32 %v252, %v336
    %v338 = vpop.f32.mrf.mxu0
    %v339 = vpop.f32.mrf.mxu0
    %v340 = vpop.f32.mrf.mxu0
    %341 = vdwg.mxu0
    %v342 = vld [vmem:[%s6] sm:$0xff]
    %v343 = vmul.f32 %v337, 1.442695
    %v344 = vpow.pop %v343
    %v345 = vadd.f32 %v344, 1.0
    %v346 = vmul.f32 %v345, %v345
    %v347 = vsub.f32 %v346, 1.0
    %v348 = vmul.f32 %v337, %v347
    %v349 = vadd.f32 %v346, 1.0
    %v350 = vrcp.pop %v349
    %v351 = vmul.f32 %v348, %v350
    %vm352 = vcmp.gt.f32.partialorder %v337, 20.0
    %v353 = vsel %vm352, %v337, %v351
    %355 = vset.pattern.permute.xlu0 0
    %356 = vperm.xlu0 %355, %v342
    %v357 = vpop.permute.xlu0 %356
    %v359 = vmul.f32 %v357, %v353
    %v360 = vld [vmem:[%s7] sm:$0xff]
    %362 = vset.pattern.permute.xlu0 0
    %363 = vperm.xlu0 %362, %v360
    %v364 = vpop.permute.xlu0 %363
    %v366 = vadd.f32 %v359, %v364
    %v367 = vmul.f32 %v366, 1.442695
    %v368 = vpow.pop %v367
    %v369 = vadd.f32 %v368, 1.0
    %v370 = vmul.f32 %v369, %v369
    %v371 = vsub.f32 %v370, 1.0
    %v372 = vmul.f32 %v366, %v371
    %v373 = vadd.f32 %v370, 1.0
    %v374 = vrcp.pop %v373
    %v375 = vmul.f32 %v372, %v374
    %vm376 = vcmp.gt.f32.partialorder %v366, 20.0
    %v377 = vsel %vm376, %v366, %v375
    %v378 = vadd.f32 %v377, %v337
    %v379 = vld [vmem:[%s8] sm:$0xff]
    %v380 = vld [vmem:[%s9] sm:$0xff]
    %382 = vset.pattern.permute.xlu0 0
    %383 = vperm.xlu0 %382, %v380
    %v384 = vpop.permute.xlu0 %383
    %vm386 = vcmask 64512
    %v388 = vsel %vm386, %v379, 0
    %390 = vmatprep.subr.mxu0 0.0
    %391 = vmatpush1.msra.mxu0 0.0
    %392 = vmatprep.subr.mxu0 0.0
    %393 = vmatpush1.msra.mxu0 0.0
    %394 = vmatprep.subr.mxu0 0.0
    %395 = vmatpush1.msra.mxu0 0.0
    %396 = vmatprep.subr.mxu0 0.0
    %397 = vmatpush1.msra.mxu0 0.0
    %398 = vmatprep.subr.mxu0 0.0
    %399 = vmatpush1.msra.mxu0 0.0
    %400 = vmatprep.subr.mxu0 0.0
    %401 = vmatpush1.msra.mxu0 0.0
    %402 = vmatprep.subr.mxu0 0.0
    %403 = vmatpush1.msra.mxu0 0.0
    %404 = vmatprep.subr.mxu0 0.0
    %405 = vmatpush1.msra.mxu0 0.0
    %406 = vmatprep.subr.mxu0 0.0
    %407 = vmatpush1.msra.mxu0 0.0
    %408 = vmatprep.subr.mxu0 0.0
    %409 = vmatpush1.msra.mxu0 0.0
    %410 = vmatprep.subr.mxu0 0.0
    %411 = vmatpush1.msra.mxu0 0.0
    %412 = vmatprep.subr.mxu0 0.0
    %413 = vmatpush1.msra.mxu0 0.0
    %414 = vmatprep.subr.mxu0 0.0
    %415 = vmatpush1.msra.mxu0 0.0
    %416 = vmatprep.subr.mxu0 0.0
    %417 = vmatpush1.msra.mxu0 0.0
    %418 = vmatprep.subr.mxu0 0.0
    %419 = vmatpush1.msra.mxu0 0.0
    %420 = vmatprep.subr.mxu0 0.0
    %421 = vmatpush1.msra.mxu0 %v378
    %422 = vmatprep.subr.mxu0 0.0
    %423 = vmatpush2.msra.mxu0 0.0
    %424 = vmatprep.subr.mxu0 0.0
    %425 = vmatpush2.msra.mxu0 0.0
    %426 = vmatprep.subr.mxu0 0.0
    %427 = vmatpush2.msra.mxu0 0.0
    %428 = vmatprep.subr.mxu0 0.0
    %429 = vmatpush2.msra.mxu0 0.0
    %430 = vmatprep.subr.mxu0 0.0
    %431 = vmatpush2.msra.mxu0 0.0
    %432 = vmatprep.subr.mxu0 0.0
    %433 = vmatpush2.msra.mxu0 0.0
    %434 = vmatprep.subr.mxu0 0.0
    %435 = vmatpush2.msra.mxu0 0.0
    %436 = vmatprep.subr.mxu0 0.0
    %437 = vmatpush2.msra.mxu0 0.0
    %438 = vmatprep.subr.mxu0 0.0
    %439 = vmatpush2.msra.mxu0 0.0
    %440 = vmatprep.subr.mxu0 0.0
    %441 = vmatpush2.msra.mxu0 0.0
    %442 = vmatprep.subr.mxu0 0.0
    %443 = vmatpush2.msra.mxu0 0.0
    %444 = vmatprep.subr.mxu0 0.0
    %445 = vmatpush2.msra.mxu0 0.0
    %446 = vmatprep.subr.mxu0 0.0
    %447 = vmatpush2.msra.mxu0 0.0
    %448 = vmatprep.subr.mxu0 0.0
    %449 = vmatpush2.msra.mxu0 0.0
    %450 = vmatprep.subr.mxu0 0.0
    %451 = vmatpush2.msra.mxu0 0.0
    %452 = vmatprep.subr.mxu0 0.0
    %453 = vmatpush2.msra.mxu0 0.0
    %454 = vmatprep.mubr.f32.mxu0 0.0
    %455 = vmatmul.mubr.f32.gmra.mxu0 %v388
    %v456 = vpop.f32.mrf.mxu0
    %v457 = vadd.f32 %v384, %v456
    %v458 = vpop.f32.mrf.mxu0
    %459 = vdwg.mxu0
    %460 = vst [vmem:[#allocation10] sm:$0xff] %v457
    // Predicated region
    $region58: #{tpu_custom_call.1} parent=1 // pred_check
      _
    $region59: #{tpu_custom_call.1} parent=1 // pred_check_branch
      %462 = sbr.rel (0) target = $region61
    $region60: #{tpu_custom_call.1} parent=1 // pred_region
      %s464 = ssub.s32 128, 128
      %465 = vsyncadd [#allocation4], %s464
      %s467 = sshll.u32 [#allocation10], 4
      %s468 = int_to_ptr.vmem [resolvable:$true] %s467
      %470 = dma.vmem_to_hbm [thread:$0]  %s468, 128, %s10, [#allocation4]
    $region61: #{tpu_custom_call.1} parent=1 // pred_fallthru
      _
    // Predicated region
    $region62: #{tpu_custom_call.1} parent=1 // pred_check
      _
    $region63: #{tpu_custom_call.1} parent=1 // pred_check_branch
      %472 = sbr.rel (0) target = $region65
    $region64: #{tpu_custom_call.1} parent=1 // pred_region
      %473 = dma.done [#allocation4], 128
    $region65: #{tpu_custom_call.1} parent=1 // pred_fallthru
      _
    %474 = vsyncpa [#allocation3], 1
    %475 = vsyncpa [#allocation8], 1
    %476 = vsyncpa [#allocation4], 1
    %477 = vsyncpa [#allocation5], 1

</llo_original>
